<compile_context>
chip_gen: v5e
topology: v5e:2x2
jax: 0.10.0
libtpu: 0.0.40
codegen_flags: <defaults>
</compile_context>

<pallas_src>
import jax
import jax.numpy as jnp
from jax import lax
from jax.experimental import pallas as pl
from jax.experimental.pallas import tpu as pltpu

VOCAB = 16     # input_size (vocabulary)
EMB   = 32     # embedding_size
HID   = 32     # hidden_size

GP   = 128          # per-gate lane padding (full vreg lane width)
EMBP = 128          # padded embedding width (contraction dim of input matmul)
NG   = 3 * GP       # gate width: [ r | z | n ] * 128 = 384


def gru_encoder_kernel(tok_ref, emb_ref, h0_ref, wih_ref, whh_ref,
                       bih_ref, bhh_ref, out_ref, x_scr, gi_scr):
    # tok_ref : SMEM (T,) int32        -- scalar-prefetched token ids
    # emb_ref : VMEM (VOCAB, EMBP)     -- resident, lane-padded embedding table
    # h0_ref  : VMEM (1, GP)           -- initial hidden, lane-padded
    # wih_ref : VMEM (EMBP, NG)        -- input  weight Wih^T, gate-padded
    # whh_ref : VMEM (GP,   NG)        -- recurrent weight Whh^T, gate-padded
    # bih_ref : VMEM (1, NG)           -- input bias, gate-padded
    # bhh_ref : VMEM (1, NG)           -- recurrent bias, gate-padded
    # out_ref : VMEM (T, GP)           -- hidden-state history (lane-dense slab)
    # x_scr   : VMEM (TP, EMBP)        -- gathered embeddings for the batched matmul
    # gi_scr  : VMEM (TP, NG)          -- precomputed input projections
    T = out_ref.shape[0]

    # Phase 0: clear the gather scratch (keeps pad rows finite; pad rows of gi
    # are never read by the recurrence).
    x_scr[...] = jnp.zeros_like(x_scr)

    # Phase 1: gather all embeddings from the resident table (static loop,
    # T is a compile-time constant; SMEM scalar read -> dynamic VMEM row read).
    for t in range(T):
        x_scr[pl.ds(t, 1), :] = emb_ref[pl.ds(tok_ref[t], 1), :]

    # Phase 2: one batched MXU matmul for every step's input projection.
    gi_scr[...] = jnp.dot(x_scr[...], wih_ref[...],
                          preferred_element_type=jnp.float32) + bih_ref[...]

    # Phase 3: the recurrence. Only h @ Whh per step; the RHS is loop-invariant
    # so its MXU push can be hoisted/kept stationary across steps.
    # TODO(synk): if the bundle dump shows the Whh push repeated per step,
    # switch to explicit pltpu.matmul_push_rhs / matmul_acc_lhs / matmul_pop.
    def step(t, h):
        gh = jnp.dot(h, whh_ref[...],
                     preferred_element_type=jnp.float32) + bhh_ref[...]
        gi = gi_scr[pl.ds(t, 1), :]                       # (1, NG)

        r = jax.nn.sigmoid(gi[:, 0 * GP:1 * GP] + gh[:, 0 * GP:1 * GP])
        z = jax.nn.sigmoid(gi[:, 1 * GP:2 * GP] + gh[:, 1 * GP:2 * GP])
        n = jnp.tanh(gi[:, 2 * GP:3 * GP] + r * gh[:, 2 * GP:3 * GP])
        h_new = (1.0 - z) * n + z * h                     # PyTorch GRU update

        out_ref[pl.ds(t, 1), :] = h_new                   # resident VMEM store
        return h_new

    lax.fori_loop(0, T, step, h0_ref[...], unroll=True)


def pack_params(emb, wih_t, whh_t, bih, bhh):
    """Build the lane/gate-padded layouts consumed by the kernel.

    Pad columns/rows are exactly zero, which guarantees pad lanes of gi/gh are
    zero and the pad lanes of h stay zero through the recurrence.
    """
    emb_pad = jnp.zeros((VOCAB, EMBP), jnp.float32).at[:, :EMB].set(emb)

    wih = jnp.zeros((EMBP, NG), jnp.float32)
    whh = jnp.zeros((GP, NG), jnp.float32)
    bi = jnp.zeros((1, NG), jnp.float32)
    bh = jnp.zeros((1, NG), jnp.float32)
    for g in range(3):                                    # gate order: r, z, n
        wih = wih.at[:EMB, g * GP:g * GP + HID].set(wih_t[:, g * HID:(g + 1) * HID])
        whh = whh.at[:HID, g * GP:g * GP + HID].set(whh_t[:, g * HID:(g + 1) * HID])
        bi = bi.at[0, g * GP:g * GP + HID].set(bih[0, g * HID:(g + 1) * HID])
        bh = bh.at[0, g * GP:g * GP + HID].set(bhh[0, g * HID:(g + 1) * HID])
    return emb_pad, wih, whh, bi, bh


def encode_sequence(tokens, hidden, packed):
    """Run the GRU encoder over a whole token sequence in ONE kernel launch.

    Returns (outputs (T, 1, HID), final_hidden (1, 1, HID)) — the result of
    calling Encoder.forward T times, feeding the hidden state back each step.
    """
    emb_pad, wih, whh, bi, bh = packed
    toks = jnp.asarray(tokens, jnp.int32).reshape((-1,))
    T = int(toks.shape[0])
    TP = ((T + 7) // 8) * 8                               # sublane-aligned scratch rows
    h0 = jnp.zeros((1, GP), jnp.float32).at[:, :HID].set(
        hidden.reshape(1, HID).astype(jnp.float32))

    cost = pl.CostEstimate(
        flops=2 * T * EMBP * NG + 2 * T * GP * NG,
        transcendentals=3 * GP * T,
        bytes_accessed=4 * (VOCAB * EMBP + EMBP * NG + GP * NG + 2 * NG + GP + T * GP),
    )

    out = pl.pallas_call(
        gru_encoder_kernel,
        out_shape=jax.ShapeDtypeStruct((T, GP), jnp.float32),
        grid_spec=pltpu.PrefetchScalarGridSpec(
            num_scalar_prefetch=1,
            grid=(1,),                                    # whole sequence in one step
            in_specs=[
                pl.BlockSpec((VOCAB, EMBP), lambda i, tok: (0, 0)),  # resident table
                pl.BlockSpec((1, GP),       lambda i, tok: (0, 0)),  # h0
                pl.BlockSpec((EMBP, NG),    lambda i, tok: (0, 0)),  # Wih
                pl.BlockSpec((GP, NG),      lambda i, tok: (0, 0)),  # Whh
                pl.BlockSpec((1, NG),       lambda i, tok: (0, 0)),  # bih
                pl.BlockSpec((1, NG),       lambda i, tok: (0, 0)),  # bhh
            ],
            out_specs=pl.BlockSpec((T, GP), lambda i, tok: (0, 0)),
            scratch_shapes=[pltpu.VMEM((TP, EMBP), jnp.float32),
                            pltpu.VMEM((TP, NG), jnp.float32)],
        ),
        compiler_params=pltpu.CompilerParams(
            dimension_semantics=("arbitrary",)),          # sequential recurrence
        cost_estimate=cost,
    )(toks, emb_pad, h0, wih, whh, bi, bh)

    outputs = out[:, :HID]                                # drop lane padding
    final_hidden = outputs[-1].reshape(1, 1, HID)
    return outputs.reshape(T, 1, HID), final_hidden


def encoder_forward(token, hidden, packed):
    """Exact PyTorch Encoder.forward semantics: one token -> (output, hidden), both (1,1,HID)."""
    outs, h = encode_sequence(jnp.asarray(token, jnp.int32).reshape((1,)), hidden, packed)
    return outs.reshape(1, 1, HID), h


def reference_sequence(tokens, hidden, params):
    """Pure-JAX reference matching torch.nn.GRU semantics (gate order r, z, n)."""
    emb, wih_t, whh_t, bih, bhh = params
    h = hidden.reshape(1, HID).astype(jnp.float32)
    outs = []
    for tok in tokens:
        x = emb[tok][None, :]
        gi = x @ wih_t + bih
        gh = h @ whh_t + bhh
        i_r, i_z, i_n = jnp.split(gi, 3, axis=1)
        h_r, h_z, h_n = jnp.split(gh, 3, axis=1)
        r = jax.nn.sigmoid(i_r + h_r)
        z = jax.nn.sigmoid(i_z + h_z)
        n = jnp.tanh(i_n + r * h_n)
        h = (1.0 - z) * n + z * h
        outs.append(h)
    return (jnp.stack(outs, 0).reshape(len(outs), 1, HID),
            h.reshape(1, 1, HID))


def init_params(key):
    """Deterministic synthetic init (shapes match nn.Embedding + nn.GRU(EMB, HID, 1))."""
    k0, k1, k2, k3, k4 = jax.random.split(key, 5)
    bound = 1.0 / jnp.sqrt(HID)
    emb   = jax.random.normal(k0, (VOCAB, EMB), jnp.float32)
    # PyTorch stores weight_ih_l0 as (3H, E); we keep the transposed layout (E, 3H).
    wih_t = jax.random.uniform(k1, (EMB, 3 * HID), jnp.float32, -bound, bound)
    whh_t = jax.random.uniform(k2, (HID, 3 * HID), jnp.float32, -bound, bound)
    bih   = jax.random.uniform(k3, (1, 3 * HID), jnp.float32, -bound, bound)
    bhh   = jax.random.uniform(k4, (1, 3 * HID), jnp.float32, -bound, bound)
    return emb, wih_t, whh_t, bih, bhh


if __name__ == "__main__":
    key = jax.random.PRNGKey(0)
    pkey, tkey, hkey = jax.random.split(key, 3)
    params = init_params(pkey)
    packed = pack_params(*params)

    T = 8
    tokens = jax.random.randint(tkey, (T,), 0, VOCAB, jnp.int32)
    hidden0 = jnp.zeros((1, 1, HID), jnp.float32)                   # first_hidden()
    hidden1 = jax.random.normal(hkey, (1, 1, HID), jnp.float32)     # non-zero hidden

    for hidden in (hidden0, hidden1):
        # Single-step call (exact Encoder.forward semantics).
        out1, h1 = encoder_forward(tokens[0], hidden, packed)
        out1 = jax.block_until_ready(out1)
        h1 = jax.block_until_ready(h1)
        ref_out1, ref_h1 = reference_sequence(tokens[:1], hidden, params)
        assert out1.shape == (1, 1, HID) and h1.shape == (1, 1, HID)
        assert jnp.allclose(out1, ref_out1.reshape(1, 1, HID), atol=2e-5, rtol=1e-5)
        assert jnp.allclose(h1, ref_h1, atol=2e-5, rtol=1e-5)

        # Whole sequence in one kernel launch (time loop folded into the kernel).
        outs, hT = encode_sequence(tokens, hidden, packed)
        outs = jax.block_until_ready(outs)
        hT = jax.block_until_ready(hT)
        ref_outs, ref_hT = reference_sequence(tokens, hidden, params)
        assert outs.shape == (T, 1, HID) and hT.shape == (1, 1, HID)
        assert jnp.allclose(outs, ref_outs, atol=2e-5, rtol=1e-5)
        assert jnp.allclose(hT, ref_hT, atol=2e-5, rtol=1e-5)

    print("KERNEL_OK")
</pallas_src>

<mosaic_0001>
module attributes {stable_mosaic.version = 11 : i64} {
  func.func @gru_encoder_kernel(%arg0: i32, %arg1: memref<1xi32, #tpu.memory_space<smem>>, %arg2: memref<16x128xf32, #tpu.memory_space<vmem>>, %arg3: memref<1x128xf32, #tpu.memory_space<vmem>>, %arg4: memref<128x384xf32, #tpu.memory_space<vmem>>, %arg5: memref<128x384xf32, #tpu.memory_space<vmem>>, %arg6: memref<1x384xf32, #tpu.memory_space<vmem>>, %arg7: memref<1x384xf32, #tpu.memory_space<vmem>>, %arg8: memref<1x128xf32, #tpu.memory_space<vmem>>, %arg9: memref<8x128xf32, #tpu.memory_space<vmem>>, %arg10: memref<8x384xf32, #tpu.memory_space<vmem>>) attributes {dimension_semantics = [#tpu.dimension_semantics<arbitrary>], iteration_bounds = array<i64: 1>, scalar_prefetch = 1 : i64, scratch_operands = 2 : i64, tpu.core_type = #tpu.core_type<tc>, window_params = [{pipeline_mode = #tpu.pipeline_mode<synchronous>, transform_indices = @transform_0, window_bounds = array<i64: 16, 128>}, {pipeline_mode = #tpu.pipeline_mode<synchronous>, transform_indices = @transform_1, window_bounds = array<i64: 1, 128>}, {pipeline_mode = #tpu.pipeline_mode<synchronous>, transform_indices = @transform_2, window_bounds = array<i64: 128, 384>}, {pipeline_mode = #tpu.pipeline_mode<synchronous>, transform_indices = @transform_3, window_bounds = array<i64: 128, 384>}, {pipeline_mode = #tpu.pipeline_mode<synchronous>, transform_indices = @transform_4, window_bounds = array<i64: 1, 384>}, {pipeline_mode = #tpu.pipeline_mode<synchronous>, transform_indices = @transform_5, window_bounds = array<i64: 1, 384>}, {pipeline_mode = #tpu.pipeline_mode<synchronous>, transform_indices = @transform_6, window_bounds = array<i64: 1, 128>}]} {
    %cst = arith.constant 0.000000e+00 : f32
    %0 = vector.broadcast %cst : f32 to vector<8x128xf32>
    %c0 = arith.constant 0 : index
    %c0_0 = arith.constant 0 : index
    %1 = vector.load %arg9[%c0, %c0_0] : memref<8x128xf32, #tpu.memory_space<vmem>>, vector<8x128xf32>
    tpu.vector_store %arg9[%c0, %c0_0], %0 {strides = array<i32>} : memref<8x128xf32, #tpu.memory_space<vmem>>, vector<8x128xf32>,
    %c0_1 = arith.constant 0 : index
    %2 = memref.load %arg1[%c0_1] : memref<1xi32, #tpu.memory_space<smem>>
    %3 = arith.index_cast %2 : i32 to index
    %c0_2 = arith.constant 0 : index
    %4 = vector.load %arg2[%3, %c0_2] : memref<16x128xf32, #tpu.memory_space<vmem>>, vector<1x128xf32>
    %c0_3 = arith.constant 0 : index
    %c0_4 = arith.constant 0 : index
    %5 = vector.load %arg9[%c0_3, %c0_4] : memref<8x128xf32, #tpu.memory_space<vmem>>, vector<1x128xf32>
    tpu.vector_store %arg9[%c0_3, %c0_4], %4 {strides = array<i32>} : memref<8x128xf32, #tpu.memory_space<vmem>>, vector<1x128xf32>,
    %c0_5 = arith.constant 0 : index
    %c0_6 = arith.constant 0 : index
    %6 = vector.load %arg9[%c0_5, %c0_6] : memref<8x128xf32, #tpu.memory_space<vmem>>, vector<8x128xf32>
    %c0_7 = arith.constant 0 : index
    %c0_8 = arith.constant 0 : index
    %7 = vector.load %arg4[%c0_7, %c0_8] : memref<128x384xf32, #tpu.memory_space<vmem>>, vector<128x384xf32>
    %cst_9 = arith.constant dense<0.000000e+00> : vector<8x384xf32>
    %8 = tpu.matmul %6, %7, %cst_9 {dimension_numbers = #tpu.dot_dimension_numbers<[1], [0], [0], [1], [0, 0, 1, 1], [], []>} : vector<8x128xf32>, vector<128x384xf32>, vector<8x384xf32> -> vector<8x384xf32>
    %c0_10 = arith.constant 0 : index
    %c0_11 = arith.constant 0 : index
    %9 = vector.load %arg6[%c0_10, %c0_11] : memref<1x384xf32, #tpu.memory_space<vmem>>, vector<1x384xf32>
    %10 = vector.broadcast %9 : vector<1x384xf32> to vector<8x384xf32>
    %11 = arith.addf %8, %10 : vector<8x384xf32>
    %c0_12 = arith.constant 0 : index
    %c0_13 = arith.constant 0 : index
    %12 = vector.load %arg10[%c0_12, %c0_13] : memref<8x384xf32, #tpu.memory_space<vmem>>, vector<8x384xf32>
    tpu.vector_store %arg10[%c0_12, %c0_13], %11 {strides = array<i32>} : memref<8x384xf32, #tpu.memory_space<vmem>>, vector<8x384xf32>,
    %c0_14 = arith.constant 0 : index
    %c0_15 = arith.constant 0 : index
    %13 = vector.load %arg3[%c0_14, %c0_15] : memref<1x128xf32, #tpu.memory_space<vmem>>, vector<1x128xf32>
    %c0_i32 = arith.constant 0 : i32
    %c0_16 = arith.constant 0 : index
    %c0_17 = arith.constant 0 : index
    %14 = vector.load %arg5[%c0_16, %c0_17] : memref<128x384xf32, #tpu.memory_space<vmem>>, vector<128x384xf32>
    %cst_18 = arith.constant dense<0.000000e+00> : vector<1x384xf32>
    %15 = tpu.matmul %13, %14, %cst_18 {dimension_numbers = #tpu.dot_dimension_numbers<[1], [0], [0], [1], [0, 0, 1, 1], [], []>} : vector<1x128xf32>, vector<128x384xf32>, vector<1x384xf32> -> vector<1x384xf32>
    %c0_19 = arith.constant 0 : index
    %c0_20 = arith.constant 0 : index
    %16 = vector.load %arg7[%c0_19, %c0_20] : memref<1x384xf32, #tpu.memory_space<vmem>>, vector<1x384xf32>
    %17 = arith.addf %15, %16 : vector<1x384xf32>
    %18 = arith.index_cast %c0_i32 : i32 to index
    %c0_21 = arith.constant 0 : index
    %19 = vector.load %arg10[%18, %c0_21] : memref<8x384xf32, #tpu.memory_space<vmem>>, vector<1x384xf32>
    %20 = vector.extract_strided_slice %19 {offsets = [0, 0], sizes = [1, 128], strides = [1, 1]} : vector<1x384xf32> to vector<1x128xf32>
    %21 = vector.extract_strided_slice %17 {offsets = [0, 0], sizes = [1, 128], strides = [1, 1]} : vector<1x384xf32> to vector<1x128xf32>
    %22 = arith.addf %20, %21 : vector<1x128xf32>
    %23 = arith.negf %22 : vector<1x128xf32>
    %24 = math.exp %23 : vector<1x128xf32>
    %cst_22 = arith.constant 1.000000e+00 : f32
    %25 = vector.broadcast %cst_22 : f32 to vector<1x128xf32>
    %26 = arith.addf %25, %24 : vector<1x128xf32>
    %27 = arith.divf %25, %26 : vector<1x128xf32>
    %28 = vector.extract_strided_slice %19 {offsets = [0, 128], sizes = [1, 128], strides = [1, 1]} : vector<1x384xf32> to vector<1x128xf32>
    %29 = vector.extract_strided_slice %17 {offsets = [0, 128], sizes = [1, 128], strides = [1, 1]} : vector<1x384xf32> to vector<1x128xf32>
    %30 = arith.addf %28, %29 : vector<1x128xf32>
    %31 = arith.negf %30 : vector<1x128xf32>
    %32 = math.exp %31 : vector<1x128xf32>
    %cst_23 = arith.constant 1.000000e+00 : f32
    %33 = vector.broadcast %cst_23 : f32 to vector<1x128xf32>
    %34 = arith.addf %33, %32 : vector<1x128xf32>
    %35 = arith.divf %33, %34 : vector<1x128xf32>
    %36 = vector.extract_strided_slice %19 {offsets = [0, 256], sizes = [1, 128], strides = [1, 1]} : vector<1x384xf32> to vector<1x128xf32>
    %37 = vector.extract_strided_slice %17 {offsets = [0, 256], sizes = [1, 128], strides = [1, 1]} : vector<1x384xf32> to vector<1x128xf32>
    %38 = arith.mulf %27, %37 : vector<1x128xf32>
    %39 = arith.addf %36, %38 : vector<1x128xf32>
    %40 = math.tanh %39 : vector<1x128xf32>
    %cst_24 = arith.constant 1.000000e+00 : f32
    %41 = vector.broadcast %cst_24 : f32 to vector<1x128xf32>
    %42 = arith.subf %41, %35 : vector<1x128xf32>
    %43 = arith.mulf %42, %40 : vector<1x128xf32>
    %44 = arith.mulf %35, %13 : vector<1x128xf32>
    %45 = arith.addf %43, %44 : vector<1x128xf32>
    %46 = arith.index_cast %c0_i32 : i32 to index
    %c0_25 = arith.constant 0 : index
    %47 = vector.load %arg8[%46, %c0_25] : memref<1x128xf32, #tpu.memory_space<vmem>>, vector<1x128xf32>
    tpu.vector_store %arg8[%46, %c0_25], %45 {strides = array<i32>} : memref<1x128xf32, #tpu.memory_space<vmem>>, vector<1x128xf32>,
    %c1_i32 = arith.constant 1 : i32
    return
  }
  func.func @transform_0(%arg0: i32, %arg1: memref<1xi32, #tpu.memory_space<smem>>) -> (i32, i32) {
    %c0_i32 = arith.constant 0 : i32
    %c0_i32_0 = arith.constant 0 : i32
    %c0_i32_1 = arith.constant 0 : i32
    return %c0_i32, %c0_i32_0 : i32, i32
  }
  func.func @transform_1(%arg0: i32, %arg1: memref<1xi32, #tpu.memory_space<smem>>) -> (i32, i32) {
    %c0_i32 = arith.constant 0 : i32
    %c0_i32_0 = arith.constant 0 : i32
    %c0_i32_1 = arith.constant 0 : i32
    return %c0_i32, %c0_i32_0 : i32, i32
  }
  func.func @transform_2(%arg0: i32, %arg1: memref<1xi32, #tpu.memory_space<smem>>) -> (i32, i32) {
    %c0_i32 = arith.constant 0 : i32
    %c0_i32_0 = arith.constant 0 : i32
    %c0_i32_1 = arith.constant 0 : i32
    return %c0_i32, %c0_i32_0 : i32, i32
  }
  func.func @transform_3(%arg0: i32, %arg1: memref<1xi32, #tpu.memory_space<smem>>) -> (i32, i32) {
    %c0_i32 = arith.constant 0 : i32
    %c0_i32_0 = arith.constant 0 : i32
    %c0_i32_1 = arith.constant 0 : i32
    return %c0_i32, %c0_i32_0 : i32, i32
  }
  func.func @transform_4(%arg0: i32, %arg1: memref<1xi32, #tpu.memory_space<smem>>) -> (i32, i32) {
    %c0_i32 = arith.constant 0 : i32
    %c0_i32_0 = arith.constant 0 : i32
    %c0_i32_1 = arith.constant 0 : i32
    return %c0_i32, %c0_i32_0 : i32, i32
  }
  func.func @transform_5(%arg0: i32, %arg1: memref<1xi32, #tpu.memory_space<smem>>) -> (i32, i32) {
    %c0_i32 = arith.constant 0 : i32
    %c0_i32_0 = arith.constant 0 : i32
    %c0_i32_1 = arith.constant 0 : i32
    return %c0_i32, %c0_i32_0 : i32, i32
  }
  func.func @transform_6(%arg0: i32, %arg1: memref<1xi32, #tpu.memory_space<smem>>) -> (i32, i32) {
    %c0_i32 = arith.constant 0 : i32
    %c0_i32_0 = arith.constant 0 : i32
    %c0_i32_1 = arith.constant 0 : i32
    return %c0_i32, %c0_i32_0 : i32, i32
  }
}

</mosaic_0001>

<llo_original>
// kernel: tpu_custom_call.1
$region0: #{tpu_custom_call.1}
  #allocation0 [shape = 'u32[]', space=smem, size = 0x4, offset = 0x4, fixed_abs, tag = 'smem constant byte address 0x4 - core index']
  #allocation1 [shape = 'u32[72,128]{1,0:T(1,128)}', space=vmem, size = 0x9000, scoped, tag = 'internal scratch']
  #allocation2 [shape = 'f32[8,128]{1,0:T(8,128)}', space=vmem, size = 0x1000, scoped, tag = 'scratch operand']
  #allocation3 [shape = 'f32[8,384]{1,0:T(8,128)}', space=vmem, size = 0x3000, scoped, tag = 'scratch operand']
  #allocation4 [shape = 's32[1]{0}', space=sflag, size = 0x4, scoped, tag = 'scoped memory for tpu_custom_call.1']
  #allocation5 [shape = 's32[1]{0:T(128)S(6)}', space=smem, size = 0x200, scoped, tag = 'prefetched SMEM operand 0']
  %s0 = inlined_call_operand.<no memory space> [shape: s32[1], index: 0, kind: input, shape index: {}]
  %s1 = inlined_call_operand.hbm [shape: f32[16,128], index: 1, kind: input, shape index: {}]
  %s2 = inlined_call_operand.hbm [shape: f32[1,128], index: 2, kind: input, shape index: {}]
  %s3 = inlined_call_operand.hbm [shape: f32[128,384], index: 3, kind: input, shape index: {}]
  %s4 = inlined_call_operand.hbm [shape: f32[128,384], index: 4, kind: input, shape index: {}]
  %s5 = inlined_call_operand.vmem [shape: f32[1,384], index: 5, kind: input, shape index: {}]
  %s6 = inlined_call_operand.vmem [shape: f32[1,384], index: 6, kind: input, shape index: {}]
  %s7 = inlined_call_operand.hbm [shape: f32[1,128], index: 7, kind: output, shape index: {}]
  %s8 = sld [smem:[#allocation0]]
  $region50: #{tpu_custom_call.1} parent=0
    _
  %s10 = ssub.s32 1, %s8
  %s11 = scalar_select 0, %s10, %s8
  %12 = sst [smem:[#allocation5]] %s0
  $region1: #{tpu_custom_call.1} parent=0
    #allocation6 [shape = 'u8[8192]{0}', space=vmem, size = 0x2000, scoped, tag = 'input window, operand 1, single buffered']
    #allocation7 [shape = 's32[1]{0}', space=sflag, size = 0x4, scoped, tag = 'scoped memory for tpu_custom_call.1']
    #allocation8 [shape = 's32[1]{0}', space=sflag, size = 0x4, scoped, tag = 'scoped memory for tpu_custom_call.1']
    #allocation9 [shape = 'u8[512]{0}', space=vmem, size = 0x400, scoped, tag = 'input window, operand 2, single buffered']
    #allocation10 [shape = 's32[1]{0}', space=sflag, size = 0x4, scoped, tag = 'scoped memory for tpu_custom_call.1']
    #allocation11 [shape = 'u8[196608]{0}', space=vmem, size = 0x30000, scoped, tag = 'input window, operand 3, single buffered']
    #allocation12 [shape = 'u8[196608]{0}', space=vmem, size = 0x30000, scoped, tag = 'input window, operand 4, single buffered']
    #allocation13 [shape = 's32[1]{0}', space=sflag, size = 0x4, scoped, tag = 'scoped memory for tpu_custom_call.1']
    #allocation14 [shape = 'u8[512]{0}', space=vmem, size = 0x400, scoped, tag = 'output window, operand 0, single buffered']
    %13 = vsyncpa [#allocation7], 0
    %14 = vsyncpa [#allocation10], 0
    %15 = vsyncpa [#allocation13], 0
    %16 = vsyncpa [#allocation8], 0
    // Predicated region
    $region2: #{tpu_custom_call.1} parent=1 // pred_check
      _
    $region3: #{tpu_custom_call.1} parent=1 // pred_check_branch
      %18 = sbr.rel (0) target = $region5
    $region4: #{tpu_custom_call.1} parent=1 // pred_region
      %20 = vsyncadd [#allocation7], 0
      %s21 = sshll.u32 %s1, 4
      %s22 = int_to_ptr.hbm [resolvable:$true] %s21
      %s23 = sshll.u32 [#allocation6], 4
      %s24 = int_to_ptr.vmem [resolvable:$true] %s23
      %29 = dma.hbm_to_vmem [thread:$0]  %s22, 256, %s24, [#allocation7], 128, 128, 8
    $region5: #{tpu_custom_call.1} parent=1 // pred_fallthru
      _
    // Predicated region
    $region6: #{tpu_custom_call.1} parent=1 // pred_check
      _
    $region7: #{tpu_custom_call.1} parent=1 // pred_check_branch
      %31 = sbr.rel (0) target = $region9
    $region8: #{tpu_custom_call.1} parent=1 // pred_region
      %33 = vsyncadd [#allocation10], 0
      %s35 = sshll.u32 %s2, 4
      %s36 = int_to_ptr.hbm [resolvable:$true] %s35
      %s37 = sshll.u32 [#allocation9], 4
      %s38 = int_to_ptr.vmem [resolvable:$true] %s37
      %40 = dma.hbm_to_vmem [thread:$0]  %s36, 16, %s38, [#allocation10]
    $region9: #{tpu_custom_call.1} parent=1 // pred_fallthru
      _
    // Predicated region
    $region10: #{tpu_custom_call.1} parent=1 // pred_check
      _
    $region11: #{tpu_custom_call.1} parent=1 // pred_check_branch
      %42 = sbr.rel (0) target = $region13
    $region12: #{tpu_custom_call.1} parent=1 // pred_region
      %44 = vsyncadd [#allocation10], 0
      %s45 = sshll.u32 %s3, 4
      %s46 = int_to_ptr.hbm [resolvable:$true] %s45
      %s47 = sshll.u32 [#allocation11], 4
      %s48 = int_to_ptr.vmem [resolvable:$true] %s47
      %53 = dma.hbm_to_vmem [thread:$0]  %s46, 6144, %s48, [#allocation10], 384, 384, 24
    $region13: #{tpu_custom_call.1} parent=1 // pred_fallthru
      _
    // Predicated region
    $region14: #{tpu_custom_call.1} parent=1 // pred_check
      _
    $region15: #{tpu_custom_call.1} parent=1 // pred_check_branch
      %55 = sbr.rel (0) target = $region17
    $region16: #{tpu_custom_call.1} parent=1 // pred_region
      %57 = vsyncadd [#allocation13], 0
      %s58 = sshll.u32 %s4, 4
      %s59 = int_to_ptr.hbm [resolvable:$true] %s58
      %s60 = sshll.u32 [#allocation12], 4
      %s61 = int_to_ptr.vmem [resolvable:$true] %s60
      %66 = dma.hbm_to_vmem [thread:$0]  %s59, 6144, %s61, [#allocation13], 384, 384, 24
    $region17: #{tpu_custom_call.1} parent=1 // pred_fallthru
      _
    // Predicated region
    $region18: #{tpu_custom_call.1} parent=1 // pred_check
      _
    $region19: #{tpu_custom_call.1} parent=1 // pred_check_branch
      %68 = sbr.rel (0) target = $region21
    $region20: #{tpu_custom_call.1} parent=1 // pred_region
      _
    $region21: #{tpu_custom_call.1} parent=1 // pred_fallthru
      _
    // Predicated region
    $region22: #{tpu_custom_call.1} parent=1 // pred_check
      _
    $region23: #{tpu_custom_call.1} parent=1 // pred_check_branch
      %70 = sbr.rel (0) target = $region25
    $region24: #{tpu_custom_call.1} parent=1 // pred_region
      _
    $region25: #{tpu_custom_call.1} parent=1 // pred_fallthru
      _
    // Predicated region
    $region26: #{tpu_custom_call.1} parent=1 // pred_check
      _
    $region27: #{tpu_custom_call.1} parent=1 // pred_check_branch
      %72 = sbr.rel (0) target = $region29
    $region28: #{tpu_custom_call.1} parent=1 // pred_region
      %74 = dma.done [#allocation7], 256
    $region29: #{tpu_custom_call.1} parent=1 // pred_fallthru
      _
    // Predicated region
    $region30: #{tpu_custom_call.1} parent=1 // pred_check
      _
    $region31: #{tpu_custom_call.1} parent=1 // pred_check_branch
      %76 = sbr.rel (0) target = $region33
    $region32: #{tpu_custom_call.1} parent=1 // pred_region
      %78 = dma.done [#allocation10], 16
    $region33: #{tpu_custom_call.1} parent=1 // pred_fallthru
      _
    // Predicated region
    $region34: #{tpu_custom_call.1} parent=1 // pred_check
      _
    $region35: #{tpu_custom_call.1} parent=1 // pred_check_branch
      %80 = sbr.rel (0) target = $region37
    $region36: #{tpu_custom_call.1} parent=1 // pred_region
      %82 = dma.done [#allocation10], 6144
    $region37: #{tpu_custom_call.1} parent=1 // pred_fallthru
      _
    // Predicated region
    $region38: #{tpu_custom_call.1} parent=1 // pred_check
      _
    $region39: #{tpu_custom_call.1} parent=1 // pred_check_branch
      %84 = sbr.rel (0) target = $region41
    $region40: #{tpu_custom_call.1} parent=1 // pred_region
      %86 = dma.done [#allocation13], 6144
    $region41: #{tpu_custom_call.1} parent=1 // pred_fallthru
      _
    %87 = vst [vmem:[#allocation2] sm:$0xff] 0.0
    %s88 = sld [smem:[#allocation5]]
    %s89 = scalar_lea.vmem [#allocation6], %s88
    %v90 = vld [vmem:[%s89] sm:$0x1]
    %91 = vst [vmem:[#allocation2] sm:$0x1] %v90
    %v92 = vld [vmem:[#allocation2] sm:$0xff]
    %v93 = vld [vmem:[#allocation11] sm:$0xff]
    %v94 = vld [vmem:[#allocation11 + $0x8] sm:$0xff]
    %v95 = vld [vmem:[#allocation11 + $0x10] sm:$0xff]
    %v96 = vld [vmem:[#allocation11 + $0x18] sm:$0xff]
    %v97 = vld [vmem:[#allocation11 + $0x20] sm:$0xff]
    %v98 = vld [vmem:[#allocation11 + $0x28] sm:$0xff]
    %v99 = vld [vmem:[#allocation11 + $0x30] sm:$0xff]
    %v100 = vld [vmem:[#allocation11 + $0x38] sm:$0xff]
    %v101 = vld [vmem:[#allocation11 + $0x40] sm:$0xff]
    %v102 = vld [vmem:[#allocation11 + $0x48] sm:$0xff]
    %v103 = vld [vmem:[#allocation11 + $0x50] sm:$0xff]
    %v104 = vld [vmem:[#allocation11 + $0x58] sm:$0xff]
    %v105 = vld [vmem:[#allocation11 + $0x60] sm:$0xff]
    %v106 = vld [vmem:[#allocation11 + $0x68] sm:$0xff]
    %v107 = vld [vmem:[#allocation11 + $0x70] sm:$0xff]
    %v108 = vld [vmem:[#allocation11 + $0x78] sm:$0xff]
    %v109 = vld [vmem:[#allocation11 + $0x80] sm:$0xff]
    %v110 = vld [vmem:[#allocation11 + $0x88] sm:$0xff]
    %v111 = vld [vmem:[#allocation11 + $0x90] sm:$0xff]
    %v112 = vld [vmem:[#allocation11 + $0x98] sm:$0xff]
    %v113 = vld [vmem:[#allocation11 + $0xa0] sm:$0xff]
    %v114 = vld [vmem:[#allocation11 + $0xa8] sm:$0xff]
    %v115 = vld [vmem:[#allocation11 + $0xb0] sm:$0xff]
    %v116 = vld [vmem:[#allocation11 + $0xb8] sm:$0xff]
    %v117 = vld [vmem:[#allocation11 + $0xc0] sm:$0xff]
    %v118 = vld [vmem:[#allocation11 + $0xc8] sm:$0xff]
    %v119 = vld [vmem:[#allocation11 + $0xd0] sm:$0xff]
    %v120 = vld [vmem:[#allocation11 + $0xd8] sm:$0xff]
    %v121 = vld [vmem:[#allocation11 + $0xe0] sm:$0xff]
    %v122 = vld [vmem:[#allocation11 + $0xe8] sm:$0xff]
    %v123 = vld [vmem:[#allocation11 + $0xf0] sm:$0xff]
    %v124 = vld [vmem:[#allocation11 + $0xf8] sm:$0xff]
    %v125 = vld [vmem:[#allocation11 + $0x100] sm:$0xff]
    %v126 = vld [vmem:[#allocation11 + $0x108] sm:$0xff]
    %v127 = vld [vmem:[#allocation11 + $0x110] sm:$0xff]
    %v128 = vld [vmem:[#allocation11 + $0x118] sm:$0xff]
    %v129 = vld [vmem:[#allocation11 + $0x120] sm:$0xff]
    %v130 = vld [vmem:[#allocation11 + $0x128] sm:$0xff]
    %v131 = vld [vmem:[#allocation11 + $0x130] sm:$0xff]
    %v132 = vld [vmem:[#allocation11 + $0x138] sm:$0xff]
    %v133 = vld [vmem:[#allocation11 + $0x140] sm:$0xff]
    %v134 = vld [vmem:[#allocation11 + $0x148] sm:$0xff]
    %v135 = vld [vmem:[#allocation11 + $0x150] sm:$0xff]
    %v136 = vld [vmem:[#allocation11 + $0x158] sm:$0xff]
    %v137 = vld [vmem:[#allocation11 + $0x160] sm:$0xff]
    %v138 = vld [vmem:[#allocation11 + $0x168] sm:$0xff]
    %v139 = vld [vmem:[#allocation11 + $0x170] sm:$0xff]
    %v140 = vld [vmem:[#allocation11 + $0x178] sm:$0xff]
    %v141 = vld [vmem:[%s5] sm:$0x7]
    %v143 = vperm.slane %v141, 0
    %v144 = vperm.slane %v141, 1
    %v145 = vperm.slane %v141, 2
    %149 = vmatpush.msra.mxu0 %v138
    %150 = vmatpush.msra.mxu0 %v135
    %151 = vmatpush.msra.mxu0 %v132
    %152 = vmatpush.msra.mxu0 %v129
    %153 = vmatpush.msra.mxu0 %v126
    %154 = vmatpush.msra.mxu0 %v123
    %155 = vmatpush.msra.mxu0 %v120
    %156 = vmatpush.msra.mxu0 %v117
    %157 = vmatpush.msra.mxu0 %v114
    %158 = vmatpush.msra.mxu0 %v111
    %159 = vmatpush.msra.mxu0 %v108
    %160 = vmatpush.msra.mxu0 %v105
    %161 = vmatpush.msra.mxu0 %v102
    %162 = vmatpush.msra.mxu0 %v99
    %163 = vmatpush.msra.mxu0 %v96
    %164 = vmatpush.msra.mxu0 %v93
    %165 = vmatmul.f32.gmra.mxu0 %v92
    %v166 = vpop.f32.mrf.mxu0
    %v167 = vadd.f32 %v143, %v166
    %168 = vdwg.mxu0
    %169 = vmatpush.msra.mxu0 %v139
    %170 = vmatpush.msra.mxu0 %v136
    %171 = vmatpush.msra.mxu0 %v133
    %172 = vmatpush.msra.mxu0 %v130
    %173 = vmatpush.msra.mxu0 %v127
    %174 = vmatpush.msra.mxu0 %v124
    %175 = vmatpush.msra.mxu0 %v121
    %176 = vmatpush.msra.mxu0 %v118
    %177 = vmatpush.msra.mxu0 %v115
    %178 = vmatpush.msra.mxu0 %v112
    %179 = vmatpush.msra.mxu0 %v109
    %180 = vmatpush.msra.mxu0 %v106
    %181 = vmatpush.msra.mxu0 %v103
    %182 = vmatpush.msra.mxu0 %v100
    %183 = vmatpush.msra.mxu0 %v97
    %184 = vmatpush.msra.mxu0 %v94
    %185 = vmatmul.f32.gmra.mxu0 %v92
    %v186 = vpop.f32.mrf.mxu0
    %v187 = vadd.f32 %v144, %v186
    %188 = vdwg.mxu0
    %189 = vmatpush.msra.mxu0 %v140
    %190 = vmatpush.msra.mxu0 %v137
    %191 = vmatpush.msra.mxu0 %v134
    %192 = vmatpush.msra.mxu0 %v131
    %193 = vmatpush.msra.mxu0 %v128
    %194 = vmatpush.msra.mxu0 %v125
    %195 = vmatpush.msra.mxu0 %v122
    %196 = vmatpush.msra.mxu0 %v119
    %197 = vmatpush.msra.mxu0 %v116
    %198 = vmatpush.msra.mxu0 %v113
    %199 = vmatpush.msra.mxu0 %v110
    %200 = vmatpush.msra.mxu0 %v107
    %201 = vmatpush.msra.mxu0 %v104
    %202 = vmatpush.msra.mxu0 %v101
    %203 = vmatpush.msra.mxu0 %v98
    %204 = vmatpush.msra.mxu0 %v95
    %205 = vmatmul.f32.gmra.mxu0 %v92
    %v206 = vpop.f32.mrf.mxu0
    %v207 = vadd.f32 %v145, %v206
    %208 = vdwg.mxu0
    %209 = vst [vmem:[#allocation3] sm:$0xff] %v167
    %210 = vst [vmem:[#allocation3 + $0x8] sm:$0xff] %v187
    %211 = vst [vmem:[#allocation3 + $0x10] sm:$0xff] %v207
    %v212 = vld [vmem:[#allocation9] sm:$0x1]
    %v213 = vld [vmem:[#allocation12] sm:$0xff]
    %v214 = vld [vmem:[#allocation12 + $0x8] sm:$0xff]
    %v215 = vld [vmem:[#allocation12 + $0x10] sm:$0xff]
    %v216 = vld [vmem:[#allocation12 + $0x18] sm:$0xff]
    %v217 = vld [vmem:[#allocation12 + $0x20] sm:$0xff]
    %v218 = vld [vmem:[#allocation12 + $0x28] sm:$0xff]
    %v219 = vld [vmem:[#allocation12 + $0x30] sm:$0xff]
    %v220 = vld [vmem:[#allocation12 + $0x38] sm:$0xff]
    %v221 = vld [vmem:[#allocation12 + $0x40] sm:$0xff]
    %v222 = vld [vmem:[#allocation12 + $0x48] sm:$0xff]
    %v223 = vld [vmem:[#allocation12 + $0x50] sm:$0xff]
    %v224 = vld [vmem:[#allocation12 + $0x58] sm:$0xff]
    %v225 = vld [vmem:[#allocation12 + $0x60] sm:$0xff]
    %v226 = vld [vmem:[#allocation12 + $0x68] sm:$0xff]
    %v227 = vld [vmem:[#allocation12 + $0x70] sm:$0xff]
    %v228 = vld [vmem:[#allocation12 + $0x78] sm:$0xff]
    %v229 = vld [vmem:[#allocation12 + $0x80] sm:$0xff]
    %v230 = vld [vmem:[#allocation12 + $0x88] sm:$0xff]
    %v231 = vld [vmem:[#allocation12 + $0x90] sm:$0xff]
    %v232 = vld [vmem:[#allocation12 + $0x98] sm:$0xff]
    %v233 = vld [vmem:[#allocation12 + $0xa0] sm:$0xff]
    %v234 = vld [vmem:[#allocation12 + $0xa8] sm:$0xff]
    %v235 = vld [vmem:[#allocation12 + $0xb0] sm:$0xff]
    %v236 = vld [vmem:[#allocation12 + $0xb8] sm:$0xff]
    %v237 = vld [vmem:[#allocation12 + $0xc0] sm:$0xff]
    %v238 = vld [vmem:[#allocation12 + $0xc8] sm:$0xff]
    %v239 = vld [vmem:[#allocation12 + $0xd0] sm:$0xff]
    %v240 = vld [vmem:[#allocation12 + $0xd8] sm:$0xff]
    %v241 = vld [vmem:[#allocation12 + $0xe0] sm:$0xff]
    %v242 = vld [vmem:[#allocation12 + $0xe8] sm:$0xff]
    %v243 = vld [vmem:[#allocation12 + $0xf0] sm:$0xff]
    %v244 = vld [vmem:[#allocation12 + $0xf8] sm:$0xff]
    %v245 = vld [vmem:[#allocation12 + $0x100] sm:$0xff]
    %v246 = vld [vmem:[#allocation12 + $0x108] sm:$0xff]
    %v247 = vld [vmem:[#allocation12 + $0x110] sm:$0xff]
    %v248 = vld [vmem:[#allocation12 + $0x118] sm:$0xff]
    %v249 = vld [vmem:[#allocation12 + $0x120] sm:$0xff]
    %v250 = vld [vmem:[#allocation12 + $0x128] sm:$0xff]
    %v251 = vld [vmem:[#allocation12 + $0x130] sm:$0xff]
    %v252 = vld [vmem:[#allocation12 + $0x138] sm:$0xff]
    %v253 = vld [vmem:[#allocation12 + $0x140] sm:$0xff]
    %v254 = vld [vmem:[#allocation12 + $0x148] sm:$0xff]
    %v255 = vld [vmem:[#allocation12 + $0x150] sm:$0xff]
    %v256 = vld [vmem:[#allocation12 + $0x158] sm:$0xff]
    %v257 = vld [vmem:[#allocation12 + $0x160] sm:$0xff]
    %v258 = vld [vmem:[#allocation12 + $0x168] sm:$0xff]
    %v259 = vld [vmem:[#allocation12 + $0x170] sm:$0xff]
    %v260 = vld [vmem:[#allocation12 + $0x178] sm:$0xff]
    %v261 = vld [vmem:[%s6] sm:$0x7]
    %v263 = vperm.slane %v261, 0
    %v264 = vperm.slane %v261, 1
    %v265 = vperm.slane %v261, 2
    %269 = vmatpush.msra.mxu0 %v258
    %270 = vmatpush.msra.mxu0 %v255
    %271 = vmatpush.msra.mxu0 %v252
    %272 = vmatpush.msra.mxu0 %v249
    %273 = vmatpush.msra.mxu0 %v246
    %274 = vmatpush.msra.mxu0 %v243
    %275 = vmatpush.msra.mxu0 %v240
    %276 = vmatpush.msra.mxu0 %v237
    %277 = vmatpush.msra.mxu0 %v234
    %278 = vmatpush.msra.mxu0 %v231
    %279 = vmatpush.msra.mxu0 %v228
    %280 = vmatpush.msra.mxu0 %v225
    %281 = vmatpush.msra.mxu0 %v222
    %282 = vmatpush.msra.mxu0 %v219
    %283 = vmatpush.msra.mxu0 %v216
    %284 = vmatpush.msra.mxu0 %v213
    %285 = vmatmul.f32.gmra.mxu0 %v212
    %v286 = vpop.f32.mrf.mxu0
    %v287 = vadd.f32 %v263, %v286
    %288 = vdwg.mxu0
    %289 = vmatpush.msra.mxu0 %v259
    %290 = vmatpush.msra.mxu0 %v256
    %291 = vmatpush.msra.mxu0 %v253
    %292 = vmatpush.msra.mxu0 %v250
    %293 = vmatpush.msra.mxu0 %v247
    %294 = vmatpush.msra.mxu0 %v244
    %295 = vmatpush.msra.mxu0 %v241
    %296 = vmatpush.msra.mxu0 %v238
    %297 = vmatpush.msra.mxu0 %v235
    %298 = vmatpush.msra.mxu0 %v232
    %299 = vmatpush.msra.mxu0 %v229
    %300 = vmatpush.msra.mxu0 %v226
    %301 = vmatpush.msra.mxu0 %v223
    %302 = vmatpush.msra.mxu0 %v220
    %303 = vmatpush.msra.mxu0 %v217
    %304 = vmatpush.msra.mxu0 %v214
    %305 = vmatmul.f32.gmra.mxu0 %v212
    %v306 = vpop.f32.mrf.mxu0
    %v307 = vadd.f32 %v264, %v306
    %308 = vdwg.mxu0
    %309 = vmatpush.msra.mxu0 %v260
    %310 = vmatpush.msra.mxu0 %v257
    %311 = vmatpush.msra.mxu0 %v254
    %312 = vmatpush.msra.mxu0 %v251
    %313 = vmatpush.msra.mxu0 %v248
    %314 = vmatpush.msra.mxu0 %v245
    %315 = vmatpush.msra.mxu0 %v242
    %316 = vmatpush.msra.mxu0 %v239
    %317 = vmatpush.msra.mxu0 %v236
    %318 = vmatpush.msra.mxu0 %v233
    %319 = vmatpush.msra.mxu0 %v230
    %320 = vmatpush.msra.mxu0 %v227
    %321 = vmatpush.msra.mxu0 %v224
    %322 = vmatpush.msra.mxu0 %v221
    %323 = vmatpush.msra.mxu0 %v218
    %324 = vmatpush.msra.mxu0 %v215
    %325 = vmatmul.f32.gmra.mxu0 %v212
    %v326 = vpop.f32.mrf.mxu0
    %v327 = vadd.f32 %v265, %v326
    %328 = vdwg.mxu0
    %v329 = vld [vmem:[#allocation3] ss:$8 sm:$0x7]
    %v330 = vadd.f32 %v329, %v287
    %v331 = vxor.u32 %v330, 2147483648
    %v332 = vmul.f32 %v331, 1.442695
    %v333 = vpow.pop %v332
    %v334 = vadd.f32 %v333, 1.0
    %v335 = vrcp.pop %v334
    %v336 = vmul.f32 %v334, %v335
    %v337 = vsub.f32 1.0, %v336
    %v338 = vmul.f32 %v335, %v337
    %v339 = vadd.f32 %v335, %v338
    %vm340 = vweird.f32 %v334
    %vm341 = vweird.f32 %v335
    %vm342 = vmor %vm340, %vm341
    %v343 = vsel %vm342, %v335, %v339
    %v344 = vand.u32 2147483647, %v334
    %vm345 = vcmp.eq.f32.partialorder %v344, 8.507059e+37
    %v346 = vand.u32 %v334, 2147483648
    %v347 = vor.u32 1.1754944e-38, %v346
    %v348 = vsel %vm345, %v347, %v343
    %v349 = vmul.f32 1.0, %v348
    %v351 = vrot.slane %v329, 1
    %v353 = vadd.f32 %v351, %v307
    %v354 = vxor.u32 %v353, 2147483648
    %v355 = vmul.f32 %v354, 1.442695
    %v356 = vpow.pop %v355
    %v357 = vadd.f32 %v356, 1.0
    %v358 = vrcp.pop %v357
    %v359 = vmul.f32 %v357, %v358
    %v360 = vsub.f32 1.0, %v359
    %v361 = vmul.f32 %v358, %v360
    %v362 = vadd.f32 %v358, %v361
    %vm363 = vweird.f32 %v357
    %vm364 = vweird.f32 %v358
    %vm365 = vmor %vm363, %vm364
    %v366 = vsel %vm365, %v358, %v362
    %v367 = vand.u32 2147483647, %v357
    %vm368 = vcmp.eq.f32.partialorder %v367, 8.507059e+37
    %v369 = vand.u32 %v357, 2147483648
    %v370 = vor.u32 1.1754944e-38, %v369
    %v371 = vsel %vm368, %v370, %v366
    %v372 = vmul.f32 1.0, %v371
    %v373 = vmul.f32 %v349, %v327
    %v374 = vrot.slane %v329, 2
    %v376 = vadd.f32 %v374, %v373
    %v377 = vtanh.pop %v376
    %v378 = vsub.f32 1.0, %v372
    %v379 = vmul.f32 %v378, %v377
    %v380 = vmul.f32 %v372, %v212
    %v381 = vadd.f32 %v379, %v380
    %382 = vst [vmem:[#allocation14] sm:$0x1] %v381
    // Predicated region
    $region42: #{tpu_custom_call.1} parent=1 // pred_check
      _
    $region43: #{tpu_custom_call.1} parent=1 // pred_check_branch
      %384 = sbr.rel (0) target = $region45
    $region44: #{tpu_custom_call.1} parent=1 // pred_region
      %386 = vsyncadd [#allocation8], 0
      %s388 = sshll.u32 [#allocation14], 4
      %s389 = int_to_ptr.vmem [resolvable:$true] %s388
      %s390 = sshll.u32 %s7, 4
      %s391 = int_to_ptr.hbm [resolvable:$true] %s390
      %393 = dma.vmem_to_hbm [thread:$0]  %s389, 16, %s391, [#allocation8]
    $region45: #{tpu_custom_call.1} parent=1 // pred_fallthru
      _
    // Predicated region
    $region46: #{tpu_custom_call.1} parent=1 // pred_check
      _
    $region47: #{tpu_custom_call.1} parent=1 // pred_check_branch
      %395 = sbr.rel (0) target = $region49
    $region48: #{tpu_custom_call.1} parent=1 // pred_region
      %397 = dma.done [#allocation8], 16
    $region49: #{tpu_custom_call.1} parent=1 // pred_fallthru
      _
    %398 = vsyncpa [#allocation7], 1
    %399 = vsyncpa [#allocation10], 1
    %400 = vsyncpa [#allocation13], 1
    %401 = vsyncpa [#allocation8], 1

</llo_original>
